<compile_context>
chip_gen: v6e
topology: v6e:2x2x1
jax: 0.10.0
libtpu: 0.0.40
codegen_flags: <defaults>
</compile_context>

<pallas_src>
import jax
import jax.numpy as jnp
import numpy as np
from jax.experimental import pallas as pl
from jax.experimental.pallas import tpu as pltpu

EPS = 1e-5          # nn.BatchNorm1d default
MAX_TILE_M = 2048   # lane width of one output block (per perf review: 2048-4096)


def _round_up(a, b):
    return (a + b - 1) // b * b


def _stats_kernel(p_ref, w_ref, sum_ref, sq_ref):
    """Pass 1: accumulate per-channel sum / sum-of-squares of the conv output."""
    # (OCP, K) @ (K, TILE_M) -> (OCP, TILE_M), bf16 operands, f32 MXU accumulation.
    conv = jnp.dot(w_ref[...], p_ref[...], preferred_element_type=jnp.float32)

    @pl.when(pl.program_id(0) == 0)
    def _():
        sum_ref[...] = jnp.zeros_like(sum_ref)
        sq_ref[...] = jnp.zeros_like(sq_ref)

    # Cross-lane reductions (XLU).  Zero-padded M columns and zero-padded OC rows
    # contribute exactly 0, so padding does not bias the batch statistics.
    sum_ref[...] += jnp.sum(conv, axis=1, keepdims=True)
    sq_ref[...] += jnp.sum(conv * conv, axis=1, keepdims=True)


def _apply_kernel(p_ref, w_ref, scale_ref, shift_ref, o_ref):
    """Pass 2: recompute conv tile, apply folded BN scale/shift + ReLU."""
    conv = jnp.dot(w_ref[...], p_ref[...], preferred_element_type=jnp.float32)
    y = conv * scale_ref[...] + shift_ref[...]     # (OCP,1) lane-broadcast
    o_ref[...] = jnp.maximum(y, 0.0).astype(o_ref.dtype)


def _im2col_t_conv_transpose1d(x, ks, stride, padding, output_padding):
    """ConvTranspose1d as a correlation over the zero-dilated, padded input.

    Returns patches of shape (C_in*KS, N*L_out) (K-major, so the input's minor
    L axis stays the minor axis -> no lane relayout in XLA), plus L_out."""
    n, c, l = x.shape
    l_out = (l - 1) * stride - 2 * padding + ks + output_padding
    if stride > 1:
        xd = jnp.zeros((n, c, (l - 1) * stride + 1), x.dtype).at[:, :, ::stride].set(x)
    else:
        xd = x
    left = ks - 1 - padding
    right = ks - 1 - padding + output_padding
    xp = jnp.pad(xd, ((0, 0), (0, 0), (max(left, 0), max(right, 0))))
    if left < 0:
        xp = xp[:, :, -left:]
    if right < 0:
        xp = xp[:, :, :right]
    taps = [xp[:, :, j:j + l_out] for j in range(ks)]
    p = jnp.stack(taps, axis=0)                               # (KS, N, C, L_out)
    # (C, KS, N, L_out) -> (C_in*KS, N*L_out): K axis ordered (c_in, ks),
    # M axis ordered (n, l_out).
    p = p.transpose(2, 0, 1, 3).reshape(c * ks, n * l_out)
    return p, l_out


def conv_transpose_block_forward(x, weight, bias, gamma, beta,
                                 stride, padding, output_padding):
    """convTransBlock.forward: ConvTranspose1d -> BatchNorm1d (training) -> ReLU.

    x: (N, C_in, L_in) f32, weight: (C_in, C_out, KS) f32 (PyTorch layout),
    bias/gamma/beta: (C_out,).  Returns (N, C_out, L_out) f32."""
    del bias  # cancelled exactly by training-mode BatchNorm1d mean subtraction
    n, c_in, _ = x.shape
    c_in_w, oc, ks = weight.shape
    assert c_in_w == c_in

    patches_t, l_out = _im2col_t_conv_transpose1d(x, ks, stride, padding, output_padding)
    kdim, m = patches_t.shape                     # K = C_in*KS, M = N*L_out

    # MXU / lane-friendly padding.  K and OCP span full array dims; the tiled
    # M (lane) axis is a multiple of 128 with padding waste kept small.
    ocp = _round_up(oc, 128)
    kpad = _round_up(kdim, 16)                    # bf16 sublane packing
    n_tiles = max(1, -(-m // MAX_TILE_M))
    tile_m = _round_up(-(-m // n_tiles), 128)
    m_pad = tile_m * n_tiles

    patches_p = jnp.zeros((kpad, m_pad), jnp.bfloat16).at[:kdim, :m].set(
        patches_t.astype(jnp.bfloat16))
    # ConvTranspose1d weight (C_in, OC, KS): flip taps, lay out as (OC, C_in*KS).
    w_t = jnp.flip(weight, axis=-1).transpose(1, 0, 2).reshape(oc, kdim)
    w_p = jnp.zeros((ocp, kpad), jnp.bfloat16).at[:oc, :kdim].set(w_t.astype(jnp.bfloat16))

    # ---- Pass 1: training-mode BN batch statistics (tiny (OCP,1) outputs). ----
    sums, sqs = pl.pallas_call(
        _stats_kernel,
        out_shape=(jax.ShapeDtypeStruct((ocp, 1), jnp.float32),
                   jax.ShapeDtypeStruct((ocp, 1), jnp.float32)),
        grid_spec=pltpu.PrefetchScalarGridSpec(
            num_scalar_prefetch=0,
            grid=(n_tiles,),
            in_specs=[
                pl.BlockSpec((kpad, tile_m), lambda i: (0, i)),   # patches (K, M)
                pl.BlockSpec((ocp, kpad), lambda i: (0, 0)),      # weights (OCP, K)
            ],
            out_specs=[
                pl.BlockSpec((ocp, 1), lambda i: (0, 0)),         # per-channel sum
                pl.BlockSpec((ocp, 1), lambda i: (0, 0)),         # per-channel sumsq
            ]),
        compiler_params=pltpu.CompilerParams(
            dimension_semantics=("arbitrary",),                   # accumulator outputs
            vmem_limit_bytes=32 * 1024 * 1024),
    )(patches_p, w_p)

    # Fold BN (biased variance) + gamma/beta into per-channel scale/shift (f32).
    inv_m = jnp.float32(1.0 / m)
    mean = sums[:, 0] * inv_m
    var = jnp.maximum(sqs[:, 0] * inv_m - mean * mean, 0.0)
    inv_std = jax.lax.rsqrt(var + jnp.float32(EPS))
    gamma_p = jnp.zeros((ocp,), jnp.float32).at[:oc].set(gamma.astype(jnp.float32))
    beta_p = jnp.zeros((ocp,), jnp.float32).at[:oc].set(beta.astype(jnp.float32))
    scale = (inv_std * gamma_p).reshape(ocp, 1)
    shift = (beta_p - mean * inv_std * gamma_p).reshape(ocp, 1)

    # ---- Pass 2: GEMM + folded scale/shift + ReLU; tiles are independent. ----
    out_flat = pl.pallas_call(
        _apply_kernel,
        out_shape=jax.ShapeDtypeStruct((ocp, m_pad), jnp.float32),
        grid_spec=pltpu.PrefetchScalarGridSpec(
            num_scalar_prefetch=0,
            grid=(n_tiles,),
            in_specs=[
                pl.BlockSpec((kpad, tile_m), lambda i: (0, i)),   # patches (K, M)
                pl.BlockSpec((ocp, kpad), lambda i: (0, 0)),      # weights (OCP, K)
                pl.BlockSpec((ocp, 1), lambda i: (0, 0)),         # scale
                pl.BlockSpec((ocp, 1), lambda i: (0, 0)),         # shift
            ],
            out_specs=pl.BlockSpec((ocp, tile_m), lambda i: (0, i))),
        compiler_params=pltpu.CompilerParams(
            dimension_semantics=("parallel",),                    # megacore-shardable
            vmem_limit_bytes=32 * 1024 * 1024),
    )(patches_p, w_p, scale, shift)

    # (OCP, M_pad) -> (OC, N, L_out) -> (N, OC, L_out): leading-axis swap only,
    # the minor (lane) axis L_out stays minor, so no lane relayout pass.
    return out_flat[:oc, :m].reshape(oc, n, l_out).transpose(1, 0, 2)


def _reference(x, weight, bias, gamma, beta, stride, padding, output_padding):
    """Pure-JAX reference matching PyTorch ConvTranspose1d + BatchNorm1d(train) + ReLU."""
    ks = weight.shape[-1]
    w = jnp.flip(weight, axis=-1).transpose(1, 0, 2)    # (OC, C_in, KS)
    conv = jax.lax.conv_general_dilated(
        x, w,
        window_strides=(1,),
        padding=[(ks - 1 - padding, ks - 1 - padding + output_padding)],
        lhs_dilation=(stride,),
        dimension_numbers=("NCH", "OIH", "NCH"))
    conv = conv + bias.reshape(1, -1, 1)
    mean = conv.mean(axis=(0, 2), keepdims=True)
    var = ((conv - mean) ** 2).mean(axis=(0, 2), keepdims=True)
    y = (conv - mean) * jax.lax.rsqrt(var + EPS)
    y = y * gamma.reshape(1, -1, 1) + beta.reshape(1, -1, 1)
    return jnp.maximum(y, 0.0)


if __name__ == "__main__":
    key = jax.random.PRNGKey(0)
    kx, kw_, kb, kg, kbt = jax.random.split(key, 5)

    # convTransBlock(in_channels=4, out_channels=8, kernel_size=3, stride=2,
    #                padding=1, output_padding=1)  -> 2x temporal upsampling
    N, C_IN, L_IN = 2, 4, 16
    OC, KS = 8, 3
    STRIDE, PADDING, OUT_PADDING = 2, 1, 1

    x = jax.random.normal(kx, (N, C_IN, L_IN), jnp.float32)

    bound = 1.0 / np.sqrt(C_IN * KS)
    weight = jax.random.uniform(kw_, (C_IN, OC, KS), jnp.float32, -bound, bound)
    bias = jax.random.uniform(kb, (OC,), jnp.float32, -bound, bound)
    gamma = jax.random.uniform(kg, (OC,), jnp.float32, 0.5, 1.5)
    beta = jax.random.uniform(kbt, (OC,), jnp.float32, -0.5, 0.5)

    out = conv_transpose_block_forward(x, weight, bias, gamma, beta,
                                       STRIDE, PADDING, OUT_PADDING)
    out = jax.block_until_ready(out)

    ref = jax.block_until_ready(
        _reference(x, weight, bias, gamma, beta, STRIDE, PADDING, OUT_PADDING))

    out_np, ref_np = np.asarray(out), np.asarray(ref)
    # bf16 matmul operands (f32 accumulation) -> relaxed tolerance.
    if not np.allclose(out_np, ref_np, atol=2e-2, rtol=2e-2):
        max_err = float(np.max(np.abs(out_np - ref_np)))
        raise AssertionError(
            f"Pallas convTransBlock output mismatch vs reference (max abs err {max_err})")

    print("KERNEL_OK")
</pallas_src>

<mosaic_0001>
module attributes {stable_mosaic.version = 11 : i64} {
  func.func @_stats_kernel(%arg0: i32, %arg1: memref<16x128xbf16, #tpu.memory_space<vmem>>, %arg2: memref<128x16xbf16, #tpu.memory_space<vmem>>, %arg3: memref<128x1xf32, #tpu.memory_space<vmem>>, %arg4: memref<128x1xf32, #tpu.memory_space<vmem>>) attributes {dimension_semantics = [#tpu.dimension_semantics<arbitrary>], iteration_bounds = array<i64: 1>, scalar_prefetch = 0 : i64, scratch_operands = 0 : i64, tpu.core_type = #tpu.core_type<tc>, window_params = [{transform_indices = @transform_0, window_bounds = array<i64: 16, 128>}, {pipeline_mode = #tpu.pipeline_mode<synchronous>, transform_indices = @transform_1, window_bounds = array<i64: 128, 16>}, {pipeline_mode = #tpu.pipeline_mode<synchronous>, transform_indices = @transform_2, window_bounds = array<i64: 128, 1>}, {pipeline_mode = #tpu.pipeline_mode<synchronous>, transform_indices = @transform_3, window_bounds = array<i64: 128, 1>}]} {
    %c0 = arith.constant 0 : index
    %c0_0 = arith.constant 0 : index
    %0 = vector.load %arg2[%c0, %c0_0] : memref<128x16xbf16, #tpu.memory_space<vmem>>, vector<128x16xbf16>
    %c0_1 = arith.constant 0 : index
    %c0_2 = arith.constant 0 : index
    %1 = vector.load %arg1[%c0_1, %c0_2] : memref<16x128xbf16, #tpu.memory_space<vmem>>, vector<16x128xbf16>
    %cst = arith.constant dense<0.000000e+00> : vector<128x128xf32>
    %2 = tpu.matmul %0, %1, %cst {dimension_numbers = #tpu.dot_dimension_numbers<[1], [0], [0], [1], [0, 0, 1, 1], [], []>} : vector<128x16xbf16>, vector<16x128xbf16>, vector<128x128xf32> -> vector<128x128xf32>
    %c0_i32 = arith.constant 0 : i32
    %3 = arith.cmpi eq, %arg0, %c0_i32 : i32
    %4 = arith.extui %3 : i1 to i32
    %c0_i32_3 = arith.constant 0 : i32
    %5 = arith.cmpi ne, %4, %c0_i32_3 : i32
    scf.if %5 {
      %cst_14 = arith.constant 0.000000e+00 : f32
      %17 = vector.broadcast %cst_14 : f32 to vector<128x1xf32>
      %c0_15 = arith.constant 0 : index
      %c0_16 = arith.constant 0 : index
      %18 = vector.load %arg3[%c0_15, %c0_16] : memref<128x1xf32, #tpu.memory_space<vmem>>, vector<128x1xf32>
      tpu.vector_store %arg3[%c0_15, %c0_16], %17 {strides = array<i32>} : memref<128x1xf32, #tpu.memory_space<vmem>>, vector<128x1xf32>,
      %cst_17 = arith.constant 0.000000e+00 : f32
      %19 = vector.broadcast %cst_17 : f32 to vector<128x1xf32>
      %c0_18 = arith.constant 0 : index
      %c0_19 = arith.constant 0 : index
      %20 = vector.load %arg4[%c0_18, %c0_19] : memref<128x1xf32, #tpu.memory_space<vmem>>, vector<128x1xf32>
      tpu.vector_store %arg4[%c0_18, %c0_19], %19 {strides = array<i32>} : memref<128x1xf32, #tpu.memory_space<vmem>>, vector<128x1xf32>,
    } else {
    }
    %c0_4 = arith.constant 0 : index
    %c0_5 = arith.constant 0 : index
    %6 = vector.load %arg3[%c0_4, %c0_5] : memref<128x1xf32, #tpu.memory_space<vmem>>, vector<128x1xf32>
    %cst_6 = arith.constant dense<0.000000e+00> : vector<128xf32>
    %7 = vector.multi_reduction <add>, %2, %cst_6 [1] : vector<128x128xf32> to vector<128xf32>
    %8 = vector.shape_cast %7 : vector<128xf32> to vector<128x1xf32>
    %9 = arith.addf %6, %8 : vector<128x1xf32>
    %c0_7 = arith.constant 0 : index
    %c0_8 = arith.constant 0 : index
    %10 = vector.load %arg3[%c0_7, %c0_8] : memref<128x1xf32, #tpu.memory_space<vmem>>, vector<128x1xf32>
    tpu.vector_store %arg3[%c0_7, %c0_8], %9 {strides = array<i32>} : memref<128x1xf32, #tpu.memory_space<vmem>>, vector<128x1xf32>,
    %c0_9 = arith.constant 0 : index
    %c0_10 = arith.constant 0 : index
    %11 = vector.load %arg4[%c0_9, %c0_10] : memref<128x1xf32, #tpu.memory_space<vmem>>, vector<128x1xf32>
    %12 = arith.mulf %2, %2 : vector<128x128xf32>
    %cst_11 = arith.constant dense<0.000000e+00> : vector<128xf32>
    %13 = vector.multi_reduction <add>, %12, %cst_11 [1] : vector<128x128xf32> to vector<128xf32>
    %14 = vector.shape_cast %13 : vector<128xf32> to vector<128x1xf32>
    %15 = arith.addf %11, %14 : vector<128x1xf32>
    %c0_12 = arith.constant 0 : index
    %c0_13 = arith.constant 0 : index
    %16 = vector.load %arg4[%c0_12, %c0_13] : memref<128x1xf32, #tpu.memory_space<vmem>>, vector<128x1xf32>
    tpu.vector_store %arg4[%c0_12, %c0_13], %15 {strides = array<i32>} : memref<128x1xf32, #tpu.memory_space<vmem>>, vector<128x1xf32>,
    return
  }
  func.func @transform_0(%arg0: i32) -> (i32, i32) {
    %c0_i32 = arith.constant 0 : i32
    %c0_i32_0 = arith.constant 0 : i32
    return %c0_i32, %arg0 : i32, i32
  }
  func.func @transform_1(%arg0: i32) -> (i32, i32) {
    %c0_i32 = arith.constant 0 : i32
    %c0_i32_0 = arith.constant 0 : i32
    %c0_i32_1 = arith.constant 0 : i32
    return %c0_i32, %c0_i32_0 : i32, i32
  }
  func.func @transform_2(%arg0: i32) -> (i32, i32) {
    %c0_i32 = arith.constant 0 : i32
    %c0_i32_0 = arith.constant 0 : i32
    %c0_i32_1 = arith.constant 0 : i32
    return %c0_i32, %c0_i32_0 : i32, i32
  }
  func.func @transform_3(%arg0: i32) -> (i32, i32) {
    %c0_i32 = arith.constant 0 : i32
    %c0_i32_0 = arith.constant 0 : i32
    %c0_i32_1 = arith.constant 0 : i32
    return %c0_i32, %c0_i32_0 : i32, i32
  }
}

</mosaic_0001>

<llo_original>
// kernel: tpu_custom_call.1
$region0: #{tpu_custom_call.1}
  #allocation0 [shape = 'u32[]', space=smem, size = 0x4, offset = 0x4, fixed_abs, tag = 'smem constant byte address 0x4 - core index']
  #allocation1 [shape = 'u32[144,128]{1,0:T(1,128)}', space=vmem, size = 0x12000, scoped, tag = 'internal scratch']
  %s0 = inlined_call_operand.vmem [shape: bf16[16,128], index: 0, kind: input, shape index: {}]
  %s1 = inlined_call_operand.vmem [shape: bf16[128,16], index: 1, kind: input, shape index: {}]
  %s2 = inlined_call_operand.vmem [shape: f32[128,1], index: 2, kind: output, shape index: {0}]
  %s3 = inlined_call_operand.vmem [shape: f32[128,1], index: 3, kind: output, shape index: {1}]
  %4 = xla_tuple %s2, %s3
  %s5 = sld [smem:[#allocation0]]
  $region30: #{tpu_custom_call.1} parent=0
    _
  %s7 = ssub.s32 1, %s5
  %s8 = scalar_select 0, %s7, %s5
  // Predicated region
  $region2: #{tpu_custom_call.1} parent=0 // pred_check
    _
  $region3: #{tpu_custom_call.1} parent=0 // pred_check_branch
    %10 = sbr.rel (0) target = $region5
  $region4: #{tpu_custom_call.1} parent=0 // pred_region
    _
  $region5: #{tpu_custom_call.1} parent=0 // pred_fallthru
    _
  // Predicated region
  $region6: #{tpu_custom_call.1} parent=0 // pred_check
    _
  $region7: #{tpu_custom_call.1} parent=0 // pred_check_branch
    %12 = sbr.rel (0) target = $region9
  $region8: #{tpu_custom_call.1} parent=0 // pred_region
    _
  $region9: #{tpu_custom_call.1} parent=0 // pred_fallthru
    _
  %v14 = vld [vmem:[%s1] sm:$0xf]
  %v15 = vld [vmem:[%s1 + $0x4] sm:$0xf]
  %v16 = vld [vmem:[%s1 + $0x8] sm:$0xf]
  %v17 = vld [vmem:[%s1 + $0xc] sm:$0xf]
  %v18 = vld [vmem:[%s1 + $0x10] sm:$0xf]
  %v19 = vld [vmem:[%s1 + $0x14] sm:$0xf]
  %v20 = vld [vmem:[%s1 + $0x18] sm:$0xf]
  %v21 = vld [vmem:[%s1 + $0x1c] sm:$0xf]
  %v22 = vld [vmem:[%s1 + $0x20] sm:$0xf]
  %v23 = vld [vmem:[%s1 + $0x24] sm:$0xf]
  %v24 = vld [vmem:[%s1 + $0x28] sm:$0xf]
  %v25 = vld [vmem:[%s1 + $0x2c] sm:$0xf]
  %v26 = vld [vmem:[%s1 + $0x30] sm:$0xf]
  %v27 = vld [vmem:[%s1 + $0x34] sm:$0xf]
  %v28 = vld [vmem:[%s1 + $0x38] sm:$0xf]
  %v29 = vld [vmem:[%s1 + $0x3c] sm:$0xf]
  %v30 = vld [vmem:[%s0] sm:$0xf]
  %v31 = vld [vmem:[%s0 + $0x4] sm:$0xf]
  %v48 = vunpack.c.l.b16 %v14
  %v49 = vunpack.c.l.b16 %v15
  %v50 = vunpack.c.l.b16 %v16
  %v51 = vunpack.c.l.b16 %v17
  %v52 = vunpack.c.l.b16 %v18
  %v53 = vunpack.c.l.b16 %v19
  %v54 = vunpack.c.l.b16 %v20
  %v55 = vunpack.c.l.b16 %v21
  %v56 = vunpack.c.l.b16 %v22
  %v57 = vunpack.c.l.b16 %v23
  %v58 = vunpack.c.l.b16 %v24
  %v59 = vunpack.c.l.b16 %v25
  %v60 = vunpack.c.l.b16 %v26
  %v61 = vunpack.c.l.b16 %v27
  %v62 = vunpack.c.l.b16 %v28
  %v63 = vunpack.c.l.b16 %v29
  %v64 = vpack.c.b16 %v49, %v48
  %v65 = vpack.c.b16 %v51, %v50
  %v66 = vpack.c.b16 %v53, %v52
  %v67 = vpack.c.b16 %v55, %v54
  %v68 = vpack.c.b16 %v57, %v56
  %v69 = vpack.c.b16 %v59, %v58
  %v70 = vpack.c.b16 %v61, %v60
  %v71 = vpack.c.b16 %v63, %v62
  %v74 = vunpack.c.l.b16 %v30
  %v75 = vunpack.c.l.b16 %v31
  %v76 = vpack.c.b16 %v75, %v74
  %vm78 = vcmask 130048
  %v80 = vsel %vm78, %v64, 0
  %v83 = vsel %vm78, %v65, 0
  %v86 = vsel %vm78, %v66, 0
  %v89 = vsel %vm78, %v67, 0
  %v92 = vsel %vm78, %v68, 0
  %v95 = vsel %vm78, %v69, 0
  %v98 = vsel %vm78, %v70, 0
  %v101 = vsel %vm78, %v71, 0
  %103 = vmatprep.subr.bf16.mxu0 0
  %104 = vmatpush1.bf16.msra.mxu0 0
  %105 = vmatprep.subr.bf16.mxu0 0
  %106 = vmatpush1.bf16.msra.mxu0 0
  %107 = vmatprep.subr.bf16.mxu0 0
  %108 = vmatpush1.bf16.msra.mxu0 0
  %109 = vmatprep.subr.bf16.mxu0 0
  %110 = vmatpush1.bf16.msra.mxu0 0
  %111 = vmatprep.subr.bf16.mxu0 0
  %112 = vmatpush1.bf16.msra.mxu0 0
  %113 = vmatprep.subr.bf16.mxu0 0
  %114 = vmatpush1.bf16.msra.mxu0 0
  %115 = vmatprep.subr.bf16.mxu0 0
  %116 = vmatpush1.bf16.msra.mxu0 0
  %117 = vmatprep.subr.bf16.mxu0 0
  %118 = vmatpush1.bf16.msra.mxu0 %v76
  %119 = vmatprep.subr.bf16.mxu0 0
  %120 = vmatpush2.bf16.msra.mxu0 0
  %121 = vmatprep.subr.bf16.mxu0 0
  %122 = vmatpush2.bf16.msra.mxu0 0
  %123 = vmatprep.subr.bf16.mxu0 0
  %124 = vmatpush2.bf16.msra.mxu0 0
  %125 = vmatprep.subr.bf16.mxu0 0
  %126 = vmatpush2.bf16.msra.mxu0 0
  %127 = vmatprep.subr.bf16.mxu0 0
  %128 = vmatpush2.bf16.msra.mxu0 0
  %129 = vmatprep.subr.bf16.mxu0 0
  %130 = vmatpush2.bf16.msra.mxu0 0
  %131 = vmatprep.subr.bf16.mxu0 0
  %132 = vmatpush2.bf16.msra.mxu0 0
  %133 = vmatprep.subr.bf16.mxu0 0
  %134 = vmatpush2.bf16.msra.mxu0 0
  %135 = vmatprep.mubr.bf16.mxu0 0
  %136 = vmatmul.mubr.bf16.gmra.mxu0 %v80
  %v137 = vpop.f32.mrf.mxu0
  %v138 = vadd.f32 0.0, %v137
  %v139 = vpop.f32.mrf.mxu0
  %v140 = vpop.f32.mrf.mxu0
  %v141 = vadd.f32 0.0, %v140
  %v142 = vpop.f32.mrf.mxu0
  %143 = vmatprep.mubr.bf16.mxu0 0
  %144 = vmatmul.mubr.bf16.gmra.mxu0 %v83
  %v145 = vpop.f32.mrf.mxu0
  %v146 = vadd.f32 0.0, %v145
  %v147 = vpop.f32.mrf.mxu0
  %v148 = vpop.f32.mrf.mxu0
  %v149 = vadd.f32 0.0, %v148
  %v150 = vpop.f32.mrf.mxu0
  %151 = vmatprep.mubr.bf16.mxu0 0
  %152 = vmatmul.mubr.bf16.gmra.mxu0 %v86
  %v153 = vpop.f32.mrf.mxu0
  %v154 = vadd.f32 0.0, %v153
  %v155 = vpop.f32.mrf.mxu0
  %v156 = vpop.f32.mrf.mxu0
  %v157 = vadd.f32 0.0, %v156
  %v158 = vpop.f32.mrf.mxu0
  %159 = vmatprep.mubr.bf16.mxu0 0
  %160 = vmatmul.mubr.bf16.gmra.mxu0 %v89
  %v161 = vpop.f32.mrf.mxu0
  %v162 = vadd.f32 0.0, %v161
  %v163 = vpop.f32.mrf.mxu0
  %v164 = vpop.f32.mrf.mxu0
  %v165 = vadd.f32 0.0, %v164
  %v166 = vpop.f32.mrf.mxu0
  %167 = vmatprep.mubr.bf16.mxu0 0
  %168 = vmatmul.mubr.bf16.gmra.mxu0 %v92
  %v169 = vpop.f32.mrf.mxu0
  %v170 = vadd.f32 0.0, %v169
  %v171 = vpop.f32.mrf.mxu0
  %v172 = vpop.f32.mrf.mxu0
  %v173 = vadd.f32 0.0, %v172
  %v174 = vpop.f32.mrf.mxu0
  %175 = vmatprep.mubr.bf16.mxu0 0
  %176 = vmatmul.mubr.bf16.gmra.mxu0 %v95
  %v177 = vpop.f32.mrf.mxu0
  %v178 = vadd.f32 0.0, %v177
  %v179 = vpop.f32.mrf.mxu0
  %v180 = vpop.f32.mrf.mxu0
  %v181 = vadd.f32 0.0, %v180
  %v182 = vpop.f32.mrf.mxu0
  %183 = vmatprep.mubr.bf16.mxu0 0
  %184 = vmatmul.mubr.bf16.gmra.mxu0 %v98
  %v185 = vpop.f32.mrf.mxu0
  %v186 = vadd.f32 0.0, %v185
  %v187 = vpop.f32.mrf.mxu0
  %v188 = vpop.f32.mrf.mxu0
  %v189 = vadd.f32 0.0, %v188
  %v190 = vpop.f32.mrf.mxu0
  %191 = vmatprep.mubr.bf16.mxu0 0
  %192 = vmatmul.mubr.bf16.gmra.mxu0 %v101
  %v193 = vpop.f32.mrf.mxu0
  %v194 = vadd.f32 0.0, %v193
  %v195 = vpop.f32.mrf.mxu0
  %v196 = vpop.f32.mrf.mxu0
  %v197 = vadd.f32 0.0, %v196
  %v198 = vpop.f32.mrf.mxu0
  %199 = vdwg.mxu0
  %p200 = scmp.eq.s32.totalorder 0, 0
  // Predicated region
  $region10: #{tpu_custom_call.1} parent=0 // pred_check
    %p201 = pneg %p200
  $region11: #{tpu_custom_call.1} parent=0 // pred_check_branch
    %203 = sbr.rel (%p201) target = $region13
  $region12: #{tpu_custom_call.1} parent=0 // pred_region
    %vm204 = vcmask 7168
    %205 = vst.msk [vmem:[%s2] sm:$0xff] %vm204, 0.0
    %206 = vst.msk [vmem:[%s2 + $0x8] sm:$0xff] %vm204, 0.0
    %207 = vst.msk [vmem:[%s2 + $0x10] sm:$0xff] %vm204, 0.0
    %208 = vst.msk [vmem:[%s2 + $0x18] sm:$0xff] %vm204, 0.0
    %209 = vst.msk [vmem:[%s2 + $0x20] sm:$0xff] %vm204, 0.0
    %210 = vst.msk [vmem:[%s2 + $0x28] sm:$0xff] %vm204, 0.0
    %211 = vst.msk [vmem:[%s2 + $0x30] sm:$0xff] %vm204, 0.0
    %212 = vst.msk [vmem:[%s2 + $0x38] sm:$0xff] %vm204, 0.0
    %213 = vst.msk [vmem:[%s2 + $0x40] sm:$0xff] %vm204, 0.0
    %214 = vst.msk [vmem:[%s2 + $0x48] sm:$0xff] %vm204, 0.0
    %215 = vst.msk [vmem:[%s2 + $0x50] sm:$0xff] %vm204, 0.0
    %216 = vst.msk [vmem:[%s2 + $0x58] sm:$0xff] %vm204, 0.0
    %217 = vst.msk [vmem:[%s2 + $0x60] sm:$0xff] %vm204, 0.0
    %218 = vst.msk [vmem:[%s2 + $0x68] sm:$0xff] %vm204, 0.0
    %219 = vst.msk [vmem:[%s2 + $0x70] sm:$0xff] %vm204, 0.0
    %220 = vst.msk [vmem:[%s2 + $0x78] sm:$0xff] %vm204, 0.0
    %221 = vst.msk [vmem:[%s3] sm:$0xff] %vm204, 0.0
    %222 = vst.msk [vmem:[%s3 + $0x8] sm:$0xff] %vm204, 0.0
    %223 = vst.msk [vmem:[%s3 + $0x10] sm:$0xff] %vm204, 0.0
    %224 = vst.msk [vmem:[%s3 + $0x18] sm:$0xff] %vm204, 0.0
    %225 = vst.msk [vmem:[%s3 + $0x20] sm:$0xff] %vm204, 0.0
    %226 = vst.msk [vmem:[%s3 + $0x28] sm:$0xff] %vm204, 0.0
    %227 = vst.msk [vmem:[%s3 + $0x30] sm:$0xff] %vm204, 0.0
    %228 = vst.msk [vmem:[%s3 + $0x38] sm:$0xff] %vm204, 0.0
    %229 = vst.msk [vmem:[%s3 + $0x40] sm:$0xff] %vm204, 0.0
    %230 = vst.msk [vmem:[%s3 + $0x48] sm:$0xff] %vm204, 0.0
    %231 = vst.msk [vmem:[%s3 + $0x50] sm:$0xff] %vm204, 0.0
    %232 = vst.msk [vmem:[%s3 + $0x58] sm:$0xff] %vm204, 0.0
    %233 = vst.msk [vmem:[%s3 + $0x60] sm:$0xff] %vm204, 0.0
    %234 = vst.msk [vmem:[%s3 + $0x68] sm:$0xff] %vm204, 0.0
    %235 = vst.msk [vmem:[%s3 + $0x70] sm:$0xff] %vm204, 0.0
    %236 = vst.msk [vmem:[%s3 + $0x78] sm:$0xff] %vm204, 0.0
  $region13: #{tpu_custom_call.1} parent=0 // pred_fallthru
    _
  %v237 = vld [vmem:[%s2] sm:$0xff]
  %v238 = vld [vmem:[%s2 + $0x8] sm:$0xff]
  %v239 = vld [vmem:[%s2 + $0x10] sm:$0xff]
  %v240 = vld [vmem:[%s2 + $0x18] sm:$0xff]
  %v241 = vld [vmem:[%s2 + $0x20] sm:$0xff]
  %v242 = vld [vmem:[%s2 + $0x28] sm:$0xff]
  %v243 = vld [vmem:[%s2 + $0x30] sm:$0xff]
  %v244 = vld [vmem:[%s2 + $0x38] sm:$0xff]
  %v245 = vld [vmem:[%s2 + $0x40] sm:$0xff]
  %v246 = vld [vmem:[%s2 + $0x48] sm:$0xff]
  %v247 = vld [vmem:[%s2 + $0x50] sm:$0xff]
  %v248 = vld [vmem:[%s2 + $0x58] sm:$0xff]
  %v249 = vld [vmem:[%s2 + $0x60] sm:$0xff]
  %v250 = vld [vmem:[%s2 + $0x68] sm:$0xff]
  %v251 = vld [vmem:[%s2 + $0x70] sm:$0xff]
  %v252 = vld [vmem:[%s2 + $0x78] sm:$0xff]
  %253 = vadd.xlane.f32.xlu0 %v138
  %v254 = vpop.xlane.xlu0 %253
  %255 = vadd.xlane.f32.xlu0 %v141
  %v256 = vpop.xlane.xlu0 %255
  %257 = vadd.xlane.f32.xlu0 %v146
  %v258 = vpop.xlane.xlu0 %257
  %259 = vadd.xlane.f32.xlu0 %v149
  %v260 = vpop.xlane.xlu0 %259
  %261 = vadd.xlane.f32.xlu0 %v154
  %v262 = vpop.xlane.xlu0 %261
  %263 = vadd.xlane.f32.xlu0 %v157
  %v264 = vpop.xlane.xlu0 %263
  %265 = vadd.xlane.f32.xlu0 %v162
  %v266 = vpop.xlane.xlu0 %265
  %267 = vadd.xlane.f32.xlu0 %v165
  %v268 = vpop.xlane.xlu0 %267
  %269 = vadd.xlane.f32.xlu0 %v170
  %v270 = vpop.xlane.xlu0 %269
  %271 = vadd.xlane.f32.xlu0 %v173
  %v272 = vpop.xlane.xlu0 %271
  %273 = vadd.xlane.f32.xlu0 %v178
  %v274 = vpop.xlane.xlu0 %273
  %275 = vadd.xlane.f32.xlu0 %v181
  %v276 = vpop.xlane.xlu0 %275
  %277 = vadd.xlane.f32.xlu0 %v186
  %v278 = vpop.xlane.xlu0 %277
  %279 = vadd.xlane.f32.xlu0 %v189
  %v280 = vpop.xlane.xlu0 %279
  %281 = vadd.xlane.f32.xlu0 %v194
  %v282 = vpop.xlane.xlu0 %281
  %283 = vadd.xlane.f32.xlu0 %v197
  %v284 = vpop.xlane.xlu0 %283
  %v285 = vadd.f32 %v237, %v254
  %v286 = vadd.f32 %v238, %v256
  %v287 = vadd.f32 %v239, %v258
  %v288 = vadd.f32 %v240, %v260
  %v289 = vadd.f32 %v241, %v262
  %v290 = vadd.f32 %v242, %v264
  %v291 = vadd.f32 %v243, %v266
  %v292 = vadd.f32 %v244, %v268
  %v293 = vadd.f32 %v245, %v270
  %v294 = vadd.f32 %v246, %v272
  %v295 = vadd.f32 %v247, %v274
  %v296 = vadd.f32 %v248, %v276
  %v297 = vadd.f32 %v249, %v278
  %v298 = vadd.f32 %v250, %v280
  %v299 = vadd.f32 %v251, %v282
  %v300 = vadd.f32 %v252, %v284
  %vm301 = vcmask 7168
  %302 = vst.msk [vmem:[%s2] sm:$0xff] %vm301, %v285
  %303 = vst.msk [vmem:[%s2 + $0x8] sm:$0xff] %vm301, %v286
  %304 = vst.msk [vmem:[%s2 + $0x10] sm:$0xff] %vm301, %v287
  %305 = vst.msk [vmem:[%s2 + $0x18] sm:$0xff] %vm301, %v288
  %306 = vst.msk [vmem:[%s2 + $0x20] sm:$0xff] %vm301, %v289
  %307 = vst.msk [vmem:[%s2 + $0x28] sm:$0xff] %vm301, %v290
  %308 = vst.msk [vmem:[%s2 + $0x30] sm:$0xff] %vm301, %v291
  %309 = vst.msk [vmem:[%s2 + $0x38] sm:$0xff] %vm301, %v292
  %310 = vst.msk [vmem:[%s2 + $0x40] sm:$0xff] %vm301, %v293
  %311 = vst.msk [vmem:[%s2 + $0x48] sm:$0xff] %vm301, %v294
  %312 = vst.msk [vmem:[%s2 + $0x50] sm:$0xff] %vm301, %v295
  %313 = vst.msk [vmem:[%s2 + $0x58] sm:$0xff] %vm301, %v296
  %314 = vst.msk [vmem:[%s2 + $0x60] sm:$0xff] %vm301, %v297
  %315 = vst.msk [vmem:[%s2 + $0x68] sm:$0xff] %vm301, %v298
  %316 = vst.msk [vmem:[%s2 + $0x70] sm:$0xff] %vm301, %v299
  %317 = vst.msk [vmem:[%s2 + $0x78] sm:$0xff] %vm301, %v300
  %v318 = vld [vmem:[%s3] sm:$0xff]
  %v319 = vld [vmem:[%s3 + $0x8] sm:$0xff]
  %v320 = vld [vmem:[%s3 + $0x10] sm:$0xff]
  %v321 = vld [vmem:[%s3 + $0x18] sm:$0xff]
  %v322 = vld [vmem:[%s3 + $0x20] sm:$0xff]
  %v323 = vld [vmem:[%s3 + $0x28] sm:$0xff]
  %v324 = vld [vmem:[%s3 + $0x30] sm:$0xff]
  %v325 = vld [vmem:[%s3 + $0x38] sm:$0xff]
  %v326 = vld [vmem:[%s3 + $0x40] sm:$0xff]
  %v327 = vld [vmem:[%s3 + $0x48] sm:$0xff]
  %v328 = vld [vmem:[%s3 + $0x50] sm:$0xff]
  %v329 = vld [vmem:[%s3 + $0x58] sm:$0xff]
  %v330 = vld [vmem:[%s3 + $0x60] sm:$0xff]
  %v331 = vld [vmem:[%s3 + $0x68] sm:$0xff]
  %v332 = vld [vmem:[%s3 + $0x70] sm:$0xff]
  %v333 = vld [vmem:[%s3 + $0x78] sm:$0xff]
  %v334 = vmul.f32 %v138, %v138
  %v335 = vmul.f32 %v141, %v141
  %v336 = vmul.f32 %v146, %v146
  %v337 = vmul.f32 %v149, %v149
  %v338 = vmul.f32 %v154, %v154
  %v339 = vmul.f32 %v157, %v157
  %v340 = vmul.f32 %v162, %v162
  %v341 = vmul.f32 %v165, %v165
  %v342 = vmul.f32 %v170, %v170
  %v343 = vmul.f32 %v173, %v173
  %v344 = vmul.f32 %v178, %v178
  %v345 = vmul.f32 %v181, %v181
  %v346 = vmul.f32 %v186, %v186
  %v347 = vmul.f32 %v189, %v189
  %v348 = vmul.f32 %v194, %v194
  %v349 = vmul.f32 %v197, %v197
  %350 = vadd.xlane.f32.xlu0 %v334
  %v351 = vpop.xlane.xlu0 %350
  %352 = vadd.xlane.f32.xlu0 %v335
  %v353 = vpop.xlane.xlu0 %352
  %354 = vadd.xlane.f32.xlu0 %v336
  %v355 = vpop.xlane.xlu0 %354
  %356 = vadd.xlane.f32.xlu0 %v337
  %v357 = vpop.xlane.xlu0 %356
  %358 = vadd.xlane.f32.xlu0 %v338
  %v359 = vpop.xlane.xlu0 %358
  %360 = vadd.xlane.f32.xlu0 %v339
  %v361 = vpop.xlane.xlu0 %360
  %362 = vadd.xlane.f32.xlu0 %v340
  %v363 = vpop.xlane.xlu0 %362
  %364 = vadd.xlane.f32.xlu0 %v341
  %v365 = vpop.xlane.xlu0 %364
  %366 = vadd.xlane.f32.xlu0 %v342
  %v367 = vpop.xlane.xlu0 %366
  %368 = vadd.xlane.f32.xlu0 %v343
  %v369 = vpop.xlane.xlu0 %368
  %370 = vadd.xlane.f32.xlu0 %v344
  %v371 = vpop.xlane.xlu0 %370
  %372 = vadd.xlane.f32.xlu0 %v345
  %v373 = vpop.xlane.xlu0 %372
  %374 = vadd.xlane.f32.xlu0 %v346
  %v375 = vpop.xlane.xlu0 %374
  %376 = vadd.xlane.f32.xlu0 %v347
  %v377 = vpop.xlane.xlu0 %376
  %378 = vadd.xlane.f32.xlu0 %v348
  %v379 = vpop.xlane.xlu0 %378
  %380 = vadd.xlane.f32.xlu0 %v349
  %v381 = vpop.xlane.xlu0 %380
  %v382 = vadd.f32 %v318, %v351
  %v383 = vadd.f32 %v319, %v353
  %v384 = vadd.f32 %v320, %v355
  %v385 = vadd.f32 %v321, %v357
  %v386 = vadd.f32 %v322, %v359
  %v387 = vadd.f32 %v323, %v361
  %v388 = vadd.f32 %v324, %v363
  %v389 = vadd.f32 %v325, %v365
  %v390 = vadd.f32 %v326, %v367
  %v391 = vadd.f32 %v327, %v369
  %v392 = vadd.f32 %v328, %v371
  %v393 = vadd.f32 %v329, %v373
  %v394 = vadd.f32 %v330, %v375
  %v395 = vadd.f32 %v331, %v377
  %v396 = vadd.f32 %v332, %v379
  %v397 = vadd.f32 %v333, %v381
  %398 = vst.msk [vmem:[%s3] sm:$0xff] %vm301, %v382
  %399 = vst.msk [vmem:[%s3 + $0x8] sm:$0xff] %vm301, %v383
  %400 = vst.msk [vmem:[%s3 + $0x10] sm:$0xff] %vm301, %v384
  %401 = vst.msk [vmem:[%s3 + $0x18] sm:$0xff] %vm301, %v385
  %402 = vst.msk [vmem:[%s3 + $0x20] sm:$0xff] %vm301, %v386
  %403 = vst.msk [vmem:[%s3 + $0x28] sm:$0xff] %vm301, %v387
  %404 = vst.msk [vmem:[%s3 + $0x30] sm:$0xff] %vm301, %v388
  %405 = vst.msk [vmem:[%s3 + $0x38] sm:$0xff] %vm301, %v389
  %406 = vst.msk [vmem:[%s3 + $0x40] sm:$0xff] %vm301, %v390
  %407 = vst.msk [vmem:[%s3 + $0x48] sm:$0xff] %vm301, %v391
  %408 = vst.msk [vmem:[%s3 + $0x50] sm:$0xff] %vm301, %v392
  %409 = vst.msk [vmem:[%s3 + $0x58] sm:$0xff] %vm301, %v393
  %410 = vst.msk [vmem:[%s3 + $0x60] sm:$0xff] %vm301, %v394
  %411 = vst.msk [vmem:[%s3 + $0x68] sm:$0xff] %vm301, %v395
  %412 = vst.msk [vmem:[%s3 + $0x70] sm:$0xff] %vm301, %v396
  %413 = vst.msk [vmem:[%s3 + $0x78] sm:$0xff] %vm301, %v397
  // Predicated region
  $region14: #{tpu_custom_call.1} parent=0 // pred_check
    _
  $region15: #{tpu_custom_call.1} parent=0 // pred_check_branch
    %415 = sbr.rel (0) target = $region17
  $region16: #{tpu_custom_call.1} parent=0 // pred_region
    _
  $region17: #{tpu_custom_call.1} parent=0 // pred_fallthru
    _
  // Predicated region
  $region18: #{tpu_custom_call.1} parent=0 // pred_check
    _
  $region19: #{tpu_custom_call.1} parent=0 // pred_check_branch
    %417 = sbr.rel (0) target = $region21
  $region20: #{tpu_custom_call.1} parent=0 // pred_region
    _
  $region21: #{tpu_custom_call.1} parent=0 // pred_fallthru
    _
  // Predicated region
  $region22: #{tpu_custom_call.1} parent=0 // pred_check
    _
  $region23: #{tpu_custom_call.1} parent=0 // pred_check_branch
    %419 = sbr.rel (0) target = $region25
  $region24: #{tpu_custom_call.1} parent=0 // pred_region
    _
  $region25: #{tpu_custom_call.1} parent=0 // pred_fallthru
    _
  // Predicated region
  $region26: #{tpu_custom_call.1} parent=0 // pred_check
    _
  $region27: #{tpu_custom_call.1} parent=0 // pred_check_branch
    %421 = sbr.rel (0) target = $region29
  $region28: #{tpu_custom_call.1} parent=0 // pred_region
    _
  $region29: #{tpu_custom_call.1} parent=0 // pred_fallthru
    _

</llo_original>
